<compile_context>
chip_gen: v7x
topology: tpu7x:2x2x1
jax: 0.10.0
libtpu: 0.0.40
codegen_flags: <defaults>
</compile_context>

<pallas_src>
import jax
import jax.numpy as jnp
from jax import lax
from jax.experimental import pallas as pl
from jax.experimental.pallas import tpu as pltpu


def attn_general_kernel(hb_ref, enc_ref, w_ref, out_ref):
    # hb_ref : (2, H)   row 0 = hidden, row 1 = Linear bias b
    # enc_ref: (L, H)   encoder outputs for this grid step
    # w_ref  : (H, H)   torch nn.Linear weight (out, in);  Linear(x) = x @ W.T + b
    # out_ref: (1, L)   lane-dense softmax(attn_energies)
    hb = hb_ref[...]
    h = hb[0:1, :]                      # (1, H)
    b = hb[1:2, :]                      # (1, H)

    # v[j] = sum_o h[o] * W[o, j]  ->  hidden @ W, consumed untransposed (single MXU matvec)
    v = jnp.dot(h, w_ref[...], preferred_element_type=jnp.float32)      # (1, H)

    # Constant hidden . b (cancels in softmax mathematically; kept for exact fidelity).
    c = jnp.sum(h * b, axis=-1, keepdims=True)                          # (1, 1)

    # scores = v @ enc.T, done as a B-transposed contraction (no explicit transpose).
    scores = lax.dot_general(
        v, enc_ref[...],
        dimension_numbers=(((1,), (1,)), ((), ())),
        preferred_element_type=jnp.float32,
    ) + c                                                                # (1, L)

    # Softmax along lanes (last dim).
    m = jnp.max(scores, axis=-1, keepdims=True)
    e = jnp.exp(scores - m)
    denom = jnp.sum(e, axis=-1, keepdims=True)
    out_ref[...] = e * pl.reciprocal(denom, approx=False)


def attn_general_batched(hidden, encoder_outputs, w, b):
    """hidden: (B, H); encoder_outputs: (B, L, H); w: (H, H); b: (H,) -> (B, L, 1)."""
    B, L, H = encoder_outputs.shape
    hidden = hidden.reshape(B, 1, H).astype(jnp.float32)
    bias = jnp.broadcast_to(b.reshape(1, 1, H).astype(jnp.float32), (B, 1, H))
    hb = jnp.concatenate([hidden, bias], axis=1)                         # (B, 2, H)

    out = pl.pallas_call(
        attn_general_kernel,
        out_shape=jax.ShapeDtypeStruct((B, 1, L), jnp.float32),
        grid=(B,),
        in_specs=[
            pl.BlockSpec((None, 2, H), lambda n: (n, 0, 0)),
            pl.BlockSpec((None, L, H), lambda n: (n, 0, 0)),
            pl.BlockSpec((H, H), lambda n: (0, 0)),   # W resident across grid steps
        ],
        out_specs=pl.BlockSpec((None, 1, L), lambda n: (n, 0, 0)),
        compiler_params=pltpu.CompilerParams(dimension_semantics=("parallel",)),
    )(hb, encoder_outputs.astype(jnp.float32), w.astype(jnp.float32))

    # Lane-dense (B, 1, L) -> torch-style (B, L, 1) (free reshape, middle dim is 1).
    return out.reshape(B, L, 1)


def attn_general(hidden, encoder_outputs, w, b):
    """Torch-shaped single call: hidden (1, H), encoder_outputs (L, 1, H) -> (L, 1)."""
    L, B1, H = encoder_outputs.shape
    assert B1 == 1, "reference module's .dot() only makes sense with batch=1"
    enc = encoder_outputs.reshape(1, L, H)
    out = attn_general_batched(hidden.reshape(1, H), enc, w, b)          # (1, L, 1)
    return out.reshape(L, 1)


def _ref_single(h, enc, w, b):
    # Pure-JAX reference of the PyTorch semantics: softmax_i( hidden . (enc_i @ W.T + b) )
    energies = (enc @ w.T + b) @ h                                       # (L,)
    return jax.nn.softmax(energies)[:, None]                             # (L, 1)


if __name__ == "__main__":
    L, H, B = 8, 32, 4   # max_len=8, hidden_size=32, batch of 4 independent decode steps

    key = jax.random.PRNGKey(0)
    k_h, k_e, k_w, k_b = jax.random.split(key, 4)

    hidden_b = jax.random.normal(k_h, (B, H), dtype=jnp.float32)
    enc_b = jax.random.normal(k_e, (B, L, H), dtype=jnp.float32)
    # Deterministic synthetic nn.Linear(H, H) parameters (weight (out,in), bias (out,))
    w = jax.random.normal(k_w, (H, H), dtype=jnp.float32) * 0.1
    b = jax.random.normal(k_b, (H,), dtype=jnp.float32) * 0.1

    # Batched launch (one pallas_call, grid over B)
    out_b = attn_general_batched(hidden_b, enc_b, w, b)
    out_b = jax.block_until_ready(out_b)
    assert out_b.shape == (B, L, 1)

    ref_b = jnp.stack([_ref_single(hidden_b[n], enc_b[n], w, b) for n in range(B)])
    assert jnp.allclose(out_b, ref_b, atol=1e-5, rtol=1e-5)

    # Torch-shaped single call: hidden (1, H), encoder_outputs (L, 1, H) -> (L, 1)
    hidden_1 = hidden_b[0:1]                                             # (1, H)
    enc_1 = enc_b[0].reshape(L, 1, H)                                    # (L, 1, H)
    out_1 = jax.block_until_ready(attn_general(hidden_1, enc_1, w, b))
    assert out_1.shape == (L, 1)
    assert jnp.allclose(out_1, _ref_single(hidden_b[0], enc_b[0], w, b), atol=1e-5, rtol=1e-5)

    print("KERNEL_OK")
</pallas_src>

<mosaic_0001>
module attributes {stable_mosaic.version = 11 : i64} {
  func.func @attn_general_kernel(%arg0: i32, %arg1: memref<1x2x32xf32, #tpu.memory_space<vmem>>, %arg2: memref<1x8x32xf32, #tpu.memory_space<vmem>>, %arg3: memref<32x32xf32, #tpu.memory_space<vmem>>, %arg4: memref<1x1x8xf32, #tpu.memory_space<vmem>>) attributes {dimension_semantics = [#tpu.dimension_semantics<parallel>], iteration_bounds = array<i64: 4>, scalar_prefetch = 0 : i64, scratch_operands = 0 : i64, tpu.core_type = #tpu.core_type<tc>, window_params = [{transform_indices = @transform_0, window_bounds = array<i64: 1, 2, 32>}, {transform_indices = @transform_1, window_bounds = array<i64: 1, 8, 32>}, {pipeline_mode = #tpu.pipeline_mode<synchronous>, transform_indices = @transform_2, window_bounds = array<i64: 32, 32>}, {transform_indices = @transform_3, window_bounds = array<i64: 1, 1, 8>}]} {
    %c0 = arith.constant 0 : index
    %c0_0 = arith.constant 0 : index
    %c0_1 = arith.constant 0 : index
    %0 = vector.load %arg1[%c0, %c0_0, %c0_1] : memref<1x2x32xf32, #tpu.memory_space<vmem>>, vector<1x2x32xf32>
    %1 = vector.shape_cast %0 : vector<1x2x32xf32> to vector<2x32xf32>
    %2 = vector.extract_strided_slice %1 {offsets = [0, 0], sizes = [1, 32], strides = [1, 1]} : vector<2x32xf32> to vector<1x32xf32>
    %3 = vector.extract_strided_slice %1 {offsets = [1, 0], sizes = [1, 32], strides = [1, 1]} : vector<2x32xf32> to vector<1x32xf32>
    %c0_2 = arith.constant 0 : index
    %c0_3 = arith.constant 0 : index
    %4 = vector.load %arg3[%c0_2, %c0_3] : memref<32x32xf32, #tpu.memory_space<vmem>>, vector<32x32xf32>
    %cst = arith.constant dense<0.000000e+00> : vector<1x32xf32>
    %5 = tpu.matmul %2, %4, %cst {dimension_numbers = #tpu.dot_dimension_numbers<[1], [0], [0], [1], [0, 0, 1, 1], [], []>} : vector<1x32xf32>, vector<32x32xf32>, vector<1x32xf32> -> vector<1x32xf32>
    %6 = arith.mulf %2, %3 : vector<1x32xf32>
    %cst_4 = arith.constant dense<0.000000e+00> : vector<1xf32>
    %7 = vector.multi_reduction <add>, %6, %cst_4 [1] : vector<1x32xf32> to vector<1xf32>
    %8 = vector.shape_cast %7 : vector<1xf32> to vector<1x1xf32>
    %c0_5 = arith.constant 0 : index
    %c0_6 = arith.constant 0 : index
    %c0_7 = arith.constant 0 : index
    %9 = vector.load %arg2[%c0_5, %c0_6, %c0_7] : memref<1x8x32xf32, #tpu.memory_space<vmem>>, vector<1x8x32xf32>
    %10 = vector.shape_cast %9 : vector<1x8x32xf32> to vector<8x32xf32>
    %cst_8 = arith.constant dense<0.000000e+00> : vector<1x8xf32>
    %11 = tpu.matmul %5, %10, %cst_8 {dimension_numbers = #tpu.dot_dimension_numbers<[1], [1], [0], [0], [0, 0, 1, 0], [], []>} : vector<1x32xf32>, vector<8x32xf32>, vector<1x8xf32> -> vector<1x8xf32>
    %12 = vector.broadcast %8 : vector<1x1xf32> to vector<1x8xf32>
    %13 = arith.addf %11, %12 : vector<1x8xf32>
    %cst_9 = arith.constant dense<0xFF800000> : vector<1xf32>
    %14 = vector.multi_reduction <maximumf>, %13, %cst_9 [1] : vector<1x8xf32> to vector<1xf32>
    %15 = vector.shape_cast %14 : vector<1xf32> to vector<1x1xf32>
    %16 = vector.broadcast %15 : vector<1x1xf32> to vector<1x8xf32>
    %17 = arith.subf %13, %16 : vector<1x8xf32>
    %18 = math.exp %17 : vector<1x8xf32>
    %cst_10 = arith.constant dense<0.000000e+00> : vector<1xf32>
    %19 = vector.multi_reduction <add>, %18, %cst_10 [1] : vector<1x8xf32> to vector<1xf32>
    %20 = vector.shape_cast %19 : vector<1xf32> to vector<1x1xf32>
    %21 = tpu.reciprocal %20 : vector<1x1xf32> -> vector<1x1xf32>
    %22 = vector.broadcast %21 : vector<1x1xf32> to vector<1x8xf32>
    %23 = arith.mulf %18, %22 : vector<1x8xf32>
    %c0_11 = arith.constant 0 : index
    %c0_12 = arith.constant 0 : index
    %c0_13 = arith.constant 0 : index
    %24 = vector.load %arg4[%c0_11, %c0_12, %c0_13] : memref<1x1x8xf32, #tpu.memory_space<vmem>>, vector<1x1x8xf32>
    %25 = vector.shape_cast %24 : vector<1x1x8xf32> to vector<1x8xf32>
    %26 = vector.shape_cast %23 : vector<1x8xf32> to vector<1x1x8xf32>
    tpu.vector_store %arg4[%c0_11, %c0_12, %c0_13], %26 {strides = array<i32>} : memref<1x1x8xf32, #tpu.memory_space<vmem>>, vector<1x1x8xf32>,
    return
  }
  func.func @transform_0(%arg0: i32) -> (i32, i32, i32) {
    %c0_i32 = arith.constant 0 : i32
    %c0_i32_0 = arith.constant 0 : i32
    %c0_i32_1 = arith.constant 0 : i32
    return %arg0, %c0_i32, %c0_i32_0 : i32, i32, i32
  }
  func.func @transform_1(%arg0: i32) -> (i32, i32, i32) {
    %c0_i32 = arith.constant 0 : i32
    %c0_i32_0 = arith.constant 0 : i32
    %c0_i32_1 = arith.constant 0 : i32
    return %arg0, %c0_i32, %c0_i32_0 : i32, i32, i32
  }
  func.func @transform_2(%arg0: i32) -> (i32, i32) {
    %c0_i32 = arith.constant 0 : i32
    %c0_i32_0 = arith.constant 0 : i32
    %c0_i32_1 = arith.constant 0 : i32
    return %c0_i32, %c0_i32_0 : i32, i32
  }
  func.func @transform_3(%arg0: i32) -> (i32, i32, i32) {
    %c0_i32 = arith.constant 0 : i32
    %c0_i32_0 = arith.constant 0 : i32
    %c0_i32_1 = arith.constant 0 : i32
    return %arg0, %c0_i32, %c0_i32_0 : i32, i32, i32
  }
}

</mosaic_0001>

<llo_original>
// kernel: tpu_custom_call.1
$region0: #{tpu_custom_call.1}
  #allocation0 [shape = 'u32[]', space=smem, size = 0x4, offset = 0x4, fixed_abs, tag = 'smem constant byte address 0x4 - core index']
  #allocation1 [shape = 'u32[144,128]{1,0:T(1,128)}', space=vmem, size = 0x12000, scoped, tag = 'internal scratch']
  %s0 = inlined_call_operand.hbm [shape: f32[4,2,32], index: 0, kind: input, shape index: {}]
  %s1 = inlined_call_operand.hbm [shape: f32[4,8,32], index: 1, kind: input, shape index: {}]
  %s2 = inlined_call_operand.hbm [shape: f32[32,32], index: 2, kind: input, shape index: {}]
  %s3 = inlined_call_operand.hbm [shape: f32[4,1,8], index: 3, kind: output, shape index: {}]
  %s4 = sld [smem:[#allocation0]]
  $region57: #{tpu_custom_call.1} parent=0
    _
  %s6 = ssub.s32 1, %s4
  %s7 = scalar_select 0, %s6, %s4
  $region1: #{tpu_custom_call.1} parent=0
    #allocation2 [shape = 'u8[2048]{0}', space=vmem, size = 0x800, scoped, tag = 'input window, operand 0']
    #allocation3 [shape = 's32[2]{0}', space=sflag, size = 0x8, scoped, tag = 'scoped memory for tpu_custom_call.1']
    #allocation4 [shape = 's32[2]{0}', space=sflag, size = 0x8, scoped, tag = 'scoped memory for tpu_custom_call.1']
    #allocation5 [shape = 'u8[8192]{0}', space=vmem, size = 0x2000, scoped, tag = 'input window, operand 1']
    #allocation6 [shape = 's32[2]{0}', space=sflag, size = 0x8, scoped, tag = 'scoped memory for tpu_custom_call.1']
    #allocation7 [shape = 'u8[16384]{0}', space=vmem, size = 0x4000, scoped, tag = 'input window, operand 2, single buffered']
    #allocation8 [shape = 'u8[1024]{0}', space=vmem, size = 0x400, scoped, tag = 'output window, operand 0']
    %8 = vsyncpa [#allocation3], 0
    %s9 = scalar_lea.sflag [#allocation3], 1
    %10 = vsyncpa %s9, 0
    %11 = vsyncpa [#allocation6], 0
    %s12 = scalar_lea.sflag [#allocation6], 1
    %13 = vsyncpa %s12, 0
    %14 = vsyncpa [#allocation4], 0
    %s15 = scalar_lea.sflag [#allocation4], 1
    %16 = vsyncpa %s15, 0
    loop: start=0, step=1, limit=6
    $region2: #{tpu_custom_call.1} parent=1 // loop_pre_header
      _
    $region3: #{tpu_custom_call.1} parent=1 // loop_header
      %s18 = sphi 0, %s22
      %p19 = scmp.ge.s32.totalorder %s18, 6
      %s28 = sphi 0, %s30
      %s31 = sphi 0, %s28
      %s32 = sphi 0, %s31
      %s48 = sphi 0, %s32
      %s54 = sphi 0, %s56
      %s57 = sphi 0, %s54
      %s58 = sphi 0, %s57
      %s74 = sphi 0, %s58
      %s78 = sphi 0, %s78
      %s80 = sphi 0, %s78
      %s81 = sphi 0, %s80
      %s95 = sphi 0, %s81
      %s101 = sphi 0, %s103
      %s104 = sphi 0, %s101
      %s105 = sphi 0, %s104
      %s121 = sphi 0, %s105
    $region4: #{tpu_custom_call.1} parent=1 // loop_header_branch
      %21 = sbr.rel (%p19) target = $region8
    $region5: #{tpu_custom_call.1} parent=1 // loop_body
      %s23 = ssub.s32 %s18, 1
      %s24 = ssub.s32 %s18, 2
      %s25 = sadd.s32 %s18, 1
      %s26 = ssub.s32 %s18, %s25
      %p27 = scmp.eq.s32.totalorder %s26, 0
      %s29 = sadd.s32 %s28, 1
      %s30 = scalar_select %p27, %s28, %s29
      %p33 = pneg %p27
      %p34 = scmp.eq.s32.totalorder %s18, 3
      %p35 = por %p33, %p34
      %p36 = scmp.ne.s32.totalorder %s28, %s31
      %p37 = scmp.eq.s32.totalorder %s18, 0
      %p38 = por %p36, %p37
      %p39 = scmp.ne.s32.totalorder %s28, %s31
      %p40 = scmp.eq.s32.totalorder %s23, 3
      %p41 = por %p39, %p40
      %p42 = scmp.ne.s32.totalorder %s31, %s32
      %p43 = scmp.eq.s32.totalorder %s23, 0
      %p44 = por %p42, %p43
      %p45 = scmp.ne.s32.totalorder %s31, %s32
      %p46 = scmp.eq.s32.totalorder %s24, 3
      %p47 = por %p45, %p46
      %p49 = scmp.ne.s32.totalorder %s32, %s48
      %p50 = scmp.eq.s32.totalorder %s24, 0
      %p51 = por %p49, %p50
      %s52 = ssub.s32 %s18, %s25
      %p53 = scmp.eq.s32.totalorder %s52, 0
      %s55 = sadd.s32 %s54, 1
      %s56 = scalar_select %p53, %s54, %s55
      %p59 = pneg %p53
      %p60 = scmp.eq.s32.totalorder %s18, 3
      %p61 = por %p59, %p60
      %p62 = scmp.ne.s32.totalorder %s54, %s57
      %p63 = scmp.eq.s32.totalorder %s18, 0
      %p64 = por %p62, %p63
      %p65 = scmp.ne.s32.totalorder %s54, %s57
      %p66 = scmp.eq.s32.totalorder %s23, 3
      %p67 = por %p65, %p66
      %p68 = scmp.ne.s32.totalorder %s57, %s58
      %p69 = scmp.eq.s32.totalorder %s23, 0
      %p70 = por %p68, %p69
      %p71 = scmp.ne.s32.totalorder %s57, %s58
      %p72 = scmp.eq.s32.totalorder %s24, 3
      %p73 = por %p71, %p72
      %p75 = scmp.ne.s32.totalorder %s58, %s74
      %p76 = scmp.eq.s32.totalorder %s24, 0
      %p77 = por %p75, %p76
      %s79 = sadd.s32 %s78, 1
      %p82 = scmp.eq.s32.totalorder %s18, 3
      %p83 = scmp.ne.s32.totalorder %s78, %s80
      %p84 = scmp.eq.s32.totalorder %s18, 0
      %p85 = por %p83, %p84
      %p86 = scmp.ne.s32.totalorder %s78, %s80
      %p87 = scmp.eq.s32.totalorder %s23, 3
      %p88 = por %p86, %p87
      %p89 = scmp.ne.s32.totalorder %s80, %s81
      %p90 = scmp.eq.s32.totalorder %s23, 0
      %p91 = por %p89, %p90
      %p92 = scmp.ne.s32.totalorder %s80, %s81
      %p93 = scmp.eq.s32.totalorder %s24, 3
      %p94 = por %p92, %p93
      %p96 = scmp.ne.s32.totalorder %s81, %s95
      %p97 = scmp.eq.s32.totalorder %s24, 0
      %p98 = por %p96, %p97
      %s99 = ssub.s32 %s18, %s25
      %p100 = scmp.eq.s32.totalorder %s99, 0
      %s102 = sadd.s32 %s101, 1
      %s103 = scalar_select %p100, %s101, %s102
      %p106 = pneg %p100
      %p107 = scmp.eq.s32.totalorder %s18, 3
      %p108 = por %p106, %p107
      %p109 = scmp.ne.s32.totalorder %s101, %s104
      %p110 = scmp.eq.s32.totalorder %s18, 0
      %p111 = por %p109, %p110
      %p112 = scmp.ne.s32.totalorder %s101, %s104
      %p113 = scmp.eq.s32.totalorder %s23, 3
      %p114 = por %p112, %p113
      %p115 = scmp.ne.s32.totalorder %s104, %s105
      %p116 = scmp.eq.s32.totalorder %s23, 0
      %p117 = por %p115, %p116
      %p118 = scmp.ne.s32.totalorder %s104, %s105
      %p119 = scmp.eq.s32.totalorder %s24, 3
      %p120 = por %p118, %p119
      %p122 = scmp.ne.s32.totalorder %s105, %s121
      %p123 = scmp.eq.s32.totalorder %s24, 0
      %p124 = por %p122, %p123
      %p125 = scmp.le.s32.totalorder 1, %s18
      %p126 = scmp.lt.s32.totalorder %s18, 5
      %p127 = pnand %p125, %p126
      %p128 = pneg %p127
      // Predicated region
      $region9: #{tpu_custom_call.1} parent=5 // pred_check
        _
      $region10: #{tpu_custom_call.1} parent=5 // pred_check_branch
        %130 = sbr.rel (%p127) target = $region12
      $region11: #{tpu_custom_call.1} parent=5 // pred_region
        %s131 = ssub.s32 %s18, 1
        // Predicated region
        $region13: #{tpu_custom_call.1} parent=11 // pred_check
          %p132 = pneg %p91
        $region14: #{tpu_custom_call.1} parent=11 // pred_check_branch
          %134 = sbr.rel (%p132) target = $region16
        $region15: #{tpu_custom_call.1} parent=11 // pred_region
          %s136 = ssub.s32 512, 512
          %137 = vsyncadd [#allocation6], %s136
          %s138 = sshll.u32 [#allocation7], 4
          %s139 = int_to_ptr.vmem [resolvable:$true] %s138
          %144 = dma.hbm_to_vmem [thread:$0]  %s2, 512, %s139, [#allocation6], 128, 128, 8
        $region16: #{tpu_custom_call.1} parent=11 // pred_fallthru
          _
      $region12: #{tpu_custom_call.1} parent=5 // pred_fallthru
        _
      %p145 = scmp.lt.s32.totalorder %s18, 4
      // Predicated region
      $region17: #{tpu_custom_call.1} parent=5 // pred_check
        %p146 = pneg %p145
      $region18: #{tpu_custom_call.1} parent=5 // pred_check_branch
        %148 = sbr.rel (%p146) target = $region20
      $region19: #{tpu_custom_call.1} parent=5 // pred_region
        // Predicated region
        $region21: #{tpu_custom_call.1} parent=19 // pred_check
          %p149 = pneg %p38
        $region22: #{tpu_custom_call.1} parent=19 // pred_check_branch
          %151 = sbr.rel (%p149) target = $region24
        $region23: #{tpu_custom_call.1} parent=19 // pred_region
          %s152 = sand.u32 %s28, 1
          %s153 = scalar_lea.sflag [#allocation3], %s152
          %s154 = sand.u32 %s28, 1
          %s155 = smul.addr %s154, 2
          %s156 = scalar_lea.vmem [#allocation2], %s155
          %s158 = ssub.s32 32, 32
          %159 = vsyncadd %s153, %s158
          %s160 = smul.addr %s18, 32
          %s161 = scalar_lea.hbm %s0, %s160
          %s163 = sshll.u32 %s156, 4
          %s164 = int_to_ptr.vmem [resolvable:$true] %s163
          %166 = dma.hbm_to_vmem [thread:$0]  %s161, 32, %s164, %s153
        $region24: #{tpu_custom_call.1} parent=19 // pred_fallthru
          _
        // Predicated region
        $region25: #{tpu_custom_call.1} parent=19 // pred_check
          %p167 = pneg %p64
        $region26: #{tpu_custom_call.1} parent=19 // pred_check_branch
          %169 = sbr.rel (%p167) target = $region28
        $region27: #{tpu_custom_call.1} parent=19 // pred_region
          %s170 = sand.u32 %s18, 1
          %s171 = scalar_lea.sflag [#allocation6], %s170
          %s172 = sand.u32 %s54, 1
          %s173 = smul.addr %s172, 8
          %s174 = scalar_lea.vmem [#allocation5], %s173
          %s176 = ssub.s32 128, 128
          %177 = vsyncadd %s171, %s176
          %s178 = smul.addr %s18, 128
          %s179 = scalar_lea.hbm %s1, %s178
          %s181 = sshll.u32 %s174, 4
          %s182 = int_to_ptr.vmem [resolvable:$true] %s181
          %184 = dma.hbm_to_vmem [thread:$0]  %s179, 128, %s182, %s171
        $region28: #{tpu_custom_call.1} parent=19 // pred_fallthru
          _
      $region20: #{tpu_custom_call.1} parent=5 // pred_fallthru
        _
      %p185 = scmp.le.s32.totalorder 1, %s18
      %p186 = scmp.lt.s32.totalorder %s18, 5
      %p187 = pnand %p185, %p186
      %p188 = pneg %p187
      // Predicated region
      $region29: #{tpu_custom_call.1} parent=5 // pred_check
        _
      $region30: #{tpu_custom_call.1} parent=5 // pred_check_branch
        %190 = sbr.rel (%p187) target = $region32
      $region31: #{tpu_custom_call.1} parent=5 // pred_region
        %s191 = ssub.s32 %s18, 1
        %s192 = sand.u32 %s31, 1
        %s193 = scalar_lea.sflag [#allocation3], %s192
        %s194 = sand.u32 %s31, 1
        %s195 = smul.addr %s194, 2
        %s196 = scalar_lea.vmem [#allocation2], %s195
        // Predicated region
        $region33: #{tpu_custom_call.1} parent=31 // pred_check
          %p197 = pneg %p44
        $region34: #{tpu_custom_call.1} parent=31 // pred_check_branch
          %199 = sbr.rel (%p197) target = $region36
        $region35: #{tpu_custom_call.1} parent=31 // pred_region
          %200 = dma.done %s193, 32
        $region36: #{tpu_custom_call.1} parent=31 // pred_fallthru
          _
        %s201 = sand.u32 %s23, 1
        %s202 = scalar_lea.sflag [#allocation6], %s201
        %s203 = sand.u32 %s57, 1
        %s204 = smul.addr %s203, 8
        %s205 = scalar_lea.vmem [#allocation5], %s204
        // Predicated region
        $region37: #{tpu_custom_call.1} parent=31 // pred_check
          %p206 = pneg %p70
        $region38: #{tpu_custom_call.1} parent=31 // pred_check_branch
          %208 = sbr.rel (%p206) target = $region40
        $region39: #{tpu_custom_call.1} parent=31 // pred_region
          %209 = dma.done %s202, 128
        $region40: #{tpu_custom_call.1} parent=31 // pred_fallthru
          _
        // Predicated region
        $region41: #{tpu_custom_call.1} parent=31 // pred_check
          %p210 = pneg %p91
        $region42: #{tpu_custom_call.1} parent=31 // pred_check_branch
          %212 = sbr.rel (%p210) target = $region44
        $region43: #{tpu_custom_call.1} parent=31 // pred_region
          %213 = dma.done [#allocation6], 512
        $region44: #{tpu_custom_call.1} parent=31 // pred_fallthru
          _
        %s214 = sand.u32 %s31, 1
        %s215 = scalar_lea.sflag [#allocation3], %s214
        %s216 = sand.u32 %s31, 1
        %s217 = smul.addr %s216, 2
        %s218 = scalar_lea.vmem [#allocation2], %s217
        %p219 = pneg %p44
        %p220 = pneg %p41
        %s221 = sand.u32 %s23, 1
        %s222 = scalar_lea.sflag [#allocation6], %s221
        %s223 = sand.u32 %s57, 1
        %s224 = smul.addr %s223, 8
        %s225 = scalar_lea.vmem [#allocation5], %s224
        %p226 = pneg %p70
        %p227 = pneg %p67
        %p228 = pneg %p91
        %p229 = pneg %p88
        %p230 = pneg %p117
        %p231 = pneg %p114
        %s232 = sand.u32 %s104, 1
        %s233 = scalar_lea.sflag [#allocation4], %s232
        %s234 = sand.u32 %s104, 1
        %s235 = scalar_lea.vmem [#allocation8], %s234
        %v236 = vld [vmem:[%s196] sm:$0x3]
        %v237 = vld [vmem:[#allocation7] sm:$0xff]
        %v238 = vld [vmem:[#allocation7 + $0x8] sm:$0xff]
        %v239 = vld [vmem:[#allocation7 + $0x10] sm:$0xff]
        %v240 = vld [vmem:[#allocation7 + $0x18] sm:$0xff]
        %vm241 = vcmask 261120
        %v243 = vsel %vm241, %v236, 0
        %245 = vmatprep.subr.mxu0 0.0
        %246 = vmatpush1.msra.mxu0 %v237
        %247 = vmatprep.subr.mxu0 0.0
        %248 = vmatpush1.msra.mxu0 %v238
        %249 = vmatprep.subr.mxu0 0.0
        %250 = vmatpush1.msra.mxu0 %v239
        %251 = vmatprep.subr.mxu0 0.0
        %252 = vmatpush1.msra.mxu0 %v240
        %253 = vmatprep.subr.mxu0 0.0
        %254 = vmatpush1.msra.mxu0 0.0
        %255 = vmatprep.subr.mxu0 0.0
        %256 = vmatpush1.msra.mxu0 0.0
        %257 = vmatprep.subr.mxu0 0.0
        %258 = vmatpush1.msra.mxu0 0.0
        %259 = vmatprep.subr.mxu0 0.0
        %260 = vmatpush1.msra.mxu0 0.0
        %261 = vmatprep.subr.mxu0 0.0
        %262 = vmatpush1.msra.mxu0 0.0
        %263 = vmatprep.subr.mxu0 0.0
        %264 = vmatpush1.msra.mxu0 0.0
        %265 = vmatprep.subr.mxu0 0.0
        %266 = vmatpush1.msra.mxu0 0.0
        %267 = vmatprep.subr.mxu0 0.0
        %268 = vmatpush1.msra.mxu0 0.0
        %269 = vmatprep.subr.mxu0 0.0
        %270 = vmatpush1.msra.mxu0 0.0
        %271 = vmatprep.subr.mxu0 0.0
        %272 = vmatpush1.msra.mxu0 0.0
        %273 = vmatprep.subr.mxu0 0.0
        %274 = vmatpush1.msra.mxu0 0.0
        %275 = vmatprep.subr.mxu0 0.0
        %276 = vmatpush1.msra.mxu0 0.0
        %277 = vmatprep.subr.mxu0 0.0
        %278 = vmatpush1.msra.mxu0 0.0
        %279 = vmatprep.subr.mxu0 0.0
        %280 = vmatpush1.msra.mxu0 0.0
        %281 = vmatprep.subr.mxu0 0.0
        %282 = vmatpush1.msra.mxu0 0.0
        %283 = vmatprep.subr.mxu0 0.0
        %284 = vmatpush1.msra.mxu0 0.0
        %285 = vmatprep.subr.mxu0 0.0
        %286 = vmatpush1.msra.mxu0 0.0
        %287 = vmatprep.subr.mxu0 0.0
        %288 = vmatpush1.msra.mxu0 0.0
        %289 = vmatprep.subr.mxu0 0.0
        %290 = vmatpush1.msra.mxu0 0.0
        %291 = vmatprep.subr.mxu0 0.0
        %292 = vmatpush1.msra.mxu0 0.0
        %293 = vmatprep.subr.mxu0 0.0
        %294 = vmatpush1.msra.mxu0 0.0
        %295 = vmatprep.subr.mxu0 0.0
        %296 = vmatpush1.msra.mxu0 0.0
        %297 = vmatprep.subr.mxu0 0.0
        %298 = vmatpush1.msra.mxu0 0.0
        %299 = vmatprep.subr.mxu0 0.0
        %300 = vmatpush1.msra.mxu0 0.0
        %301 = vmatprep.subr.mxu0 0.0
        %302 = vmatpush1.msra.mxu0 0.0
        %303 = vmatprep.subr.mxu0 0.0
        %304 = vmatpush1.msra.mxu0 0.0
        %305 = vmatprep.subr.mxu0 0.0
        %306 = vmatpush1.msra.mxu0 0.0
        %307 = vmatprep.subr.mxu0 0.0
        %308 = vmatpush1.msra.mxu0 0.0
        %309 = vmatprep.mubr.f32.mxu0 0.0
        %310 = vmatmul.mubr.f32.gmra.mrb[0].mxu0 %v243
        %v311 = vpop.f32.mrb[0].mxu0
        %v312 = vadd.f32 0.0, %v311
        %v313 = vpop.f32.mrb[0].mxu0
        %314 = vdwg.mxu0
        %v315 = vrot.slane %v236, 1
        %v317 = vmul.f32 %v236, %v315
        %vm318 = vcmask 253952
        %v319 = vsel %vm318, %v317, 0.0
        %320 = vadd.xlane.f32.xlu0 %v319
        %v321 = vpop.xlane.xlu0 %320
        %v322 = vld [vmem:[%s205] sm:$0xff]
        %v324 = vsel %vm241, %v312, 0
        %v327 = vsel %vm241, %v322, 0
        %329 = vmatprep.subr.mxu0 0.0
        %330 = vmatpush1.xpose.msra.mxu0 %v327
        %331 = vmatprep.subr.mxu0 0.0
        %332 = vmatpush1.xpose.msra.mxu0 0.0
        %333 = vmatprep.subr.mxu0 0.0
        %334 = vmatpush1.xpose.msra.mxu0 0.0
        %335 = vmatprep.subr.mxu0 0.0
        %336 = vmatpush1.xpose.msra.mxu0 0.0
        %337 = vmatprep.subr.mxu0 0.0
        %338 = vmatpush1.xpose.msra.mxu0 0.0
        %339 = vmatprep.subr.mxu0 0.0
        %340 = vmatpush1.xpose.msra.mxu0 0.0
        %341 = vmatprep.subr.mxu0 0.0
        %342 = vmatpush1.xpose.msra.mxu0 0.0
        %343 = vmatprep.subr.mxu0 0.0
        %344 = vmatpush1.xpose.msra.mxu0 0.0
        %345 = vmatprep.subr.mxu0 0.0
        %346 = vmatpush1.xpose.msra.mxu0 0.0
        %347 = vmatprep.subr.mxu0 0.0
        %348 = vmatpush1.xpose.msra.mxu0 0.0
        %349 = vmatprep.subr.mxu0 0.0
        %350 = vmatpush1.xpose.msra.mxu0 0.0
        %351 = vmatprep.subr.mxu0 0.0
        %352 = vmatpush1.xpose.msra.mxu0 0.0
        %353 = vmatprep.subr.mxu0 0.0
        %354 = vmatpush1.xpose.msra.mxu0 0.0
        %355 = vmatprep.subr.mxu0 0.0
        %356 = vmatpush1.xpose.msra.mxu0 0.0
        %357 = vmatprep.subr.mxu0 0.0
        %358 = vmatpush1.xpose.msra.mxu0 0.0
        %359 = vmatprep.subr.mxu0 0.0
        %360 = vmatpush1.xpose.msra.mxu0 0.0
        %361 = vmatprep.subr.mxu0 0.0
        %362 = vmatpush1.xpose.msra.mxu0 0.0
        %363 = vmatprep.subr.mxu0 0.0
        %364 = vmatpush1.xpose.msra.mxu0 0.0
        %365 = vmatprep.subr.mxu0 0.0
        %366 = vmatpush1.xpose.msra.mxu0 0.0
        %367 = vmatprep.subr.mxu0 0.0
        %368 = vmatpush1.xpose.msra.mxu0 0.0
        %369 = vmatprep.subr.mxu0 0.0
        %370 = vmatpush1.xpose.msra.mxu0 0.0
        %371 = vmatprep.subr.mxu0 0.0
        %372 = vmatpush1.xpose.msra.mxu0 0.0
        %373 = vmatprep.subr.mxu0 0.0
        %374 = vmatpush1.xpose.msra.mxu0 0.0
        %375 = vmatprep.subr.mxu0 0.0
        %376 = vmatpush1.xpose.msra.mxu0 0.0
        %377 = vmatprep.subr.mxu0 0.0
        %378 = vmatpush1.xpose.msra.mxu0 0.0
        %379 = vmatprep.subr.mxu0 0.0
        %380 = vmatpush1.xpose.msra.mxu0 0.0
        %381 = vmatprep.subr.mxu0 0.0
        %382 = vmatpush1.xpose.msra.mxu0 0.0
        %383 = vmatprep.subr.mxu0 0.0
        %384 = vmatpush1.xpose.msra.mxu0 0.0
        %385 = vmatprep.subr.mxu0 0.0
        %386 = vmatpush1.xpose.msra.mxu0 0.0
        %387 = vmatprep.subr.mxu0 0.0
        %388 = vmatpush1.xpose.msra.mxu0 0.0
        %389 = vmatprep.subr.mxu0 0.0
        %390 = vmatpush1.xpose.msra.mxu0 0.0
        %391 = vmatprep.subr.mxu0 0.0
        %392 = vmatpush1.xpose.msra.mxu0 0.0
        %393 = vmatprep.mubr.f32.mxu0 0.0
        %394 = vmatmul.mubr.f32.gmra.mrb[0].mxu0 %v324
        %v395 = vpop.f32.mrb[0].mxu0
        %v396 = vadd.f32 %v321, %v395
        %v397 = vpop.f32.mrb[0].mxu0
        %398 = vdwg.mxu0
        %vm399 = vcmask 57344
        %v400 = vsel %vm399, %v396, -inf
        %401 = vmax.xlane.f32.xlu0 %v400
        %v402 = vpop.xlane.xlu0 %401
        %v403 = vsub.f32 %v396, %v402
        %v404 = vmul.f32 %v403, 1.442695
        %v405 = vpow.pop %v404
        %v406 = vsel %vm399, %v405, 0.0
        %407 = vadd.xlane.f32.xlu0 %v406
        %v408 = vpop.xlane.xlu0 %407
        %v409 = vrcp.pop %v408
        %v410 = vmul.f32 %v405, %v409
        %411 = vst.msk [vmem:[%s235] sm:$0x1] %vm399, %v410
        %s412 = sand.u32 %s104, 1
        %s413 = scalar_lea.sflag [#allocation4], %s412
        %s414 = sand.u32 %s104, 1
        %s415 = scalar_lea.vmem [#allocation8], %s414
        // Predicated region
        $region45: #{tpu_custom_call.1} parent=31 // pred_check
          %p416 = pneg %p114
        $region46: #{tpu_custom_call.1} parent=31 // pred_check_branch
          %418 = sbr.rel (%p416) target = $region48
        $region47: #{tpu_custom_call.1} parent=31 // pred_region
          %s420 = ssub.s32 16, 16
          %421 = vsyncadd %s413, %s420
          %s422 = smul.addr %s23, 16
          %s423 = scalar_lea.hbm %s3, %s422
          %s425 = sshll.u32 %s415, 4
          %s426 = int_to_ptr.vmem [resolvable:$true] %s425
          %428 = dma.vmem_to_hbm [thread:$0]  %s426, 16, %s423, %s413
        $region48: #{tpu_custom_call.1} parent=31 // pred_fallthru
          _
      $region32: #{tpu_custom_call.1} parent=5 // pred_fallthru
        _
      %p429 = scmp.le.s32.totalorder 2, %s18
      // Predicated region
      $region49: #{tpu_custom_call.1} parent=5 // pred_check
        %p430 = pneg %p429
      $region50: #{tpu_custom_call.1} parent=5 // pred_check_branch
        %432 = sbr.rel (%p430) target = $region52
      $region51: #{tpu_custom_call.1} parent=5 // pred_region
        %s433 = ssub.s32 %s18, 2
        // Predicated region
        $region53: #{tpu_custom_call.1} parent=51 // pred_check
          %p434 = pneg %p120
        $region54: #{tpu_custom_call.1} parent=51 // pred_check_branch
          %436 = sbr.rel (%p434) target = $region56
        $region55: #{tpu_custom_call.1} parent=51 // pred_region
          %s437 = sand.u32 %s105, 1
          %s438 = scalar_lea.sflag [#allocation4], %s437
          %s439 = sand.u32 %s105, 1
          %s440 = scalar_lea.vmem [#allocation8], %s439
          %441 = dma.done %s438, 16
        $region56: #{tpu_custom_call.1} parent=51 // pred_fallthru
          _
      $region52: #{tpu_custom_call.1} parent=5 // pred_fallthru
        _
    $region6: #{tpu_custom_call.1} parent=1 // loop_footer
      %s22 = sadd.s32 1, %s18
    $region7: #{tpu_custom_call.1} parent=1 // loop_footer_branch
      %17 = sbr.rel target = $region3
    $region8: #{tpu_custom_call.1} parent=1 // loop_exit
      _
    %442 = vsyncpa [#allocation3], 1
    %s443 = scalar_lea.sflag [#allocation3], 1
    %444 = vsyncpa %s443, 1
    %445 = vsyncpa [#allocation6], 1
    %s446 = scalar_lea.sflag [#allocation6], 1
    %447 = vsyncpa %s446, 1
    %448 = vsyncpa [#allocation4], 1
    %s449 = scalar_lea.sflag [#allocation4], 1
    %450 = vsyncpa %s449, 1

</llo_original>
